<compile_context>
chip_gen: v7x
topology: tpu7x:2x2x1
jax: 0.10.0
libtpu: 0.0.40
codegen_flags: <defaults>
</compile_context>

<pallas_src>
import functools

import jax
import jax.numpy as jnp
from jax.experimental import pallas as pl
from jax.experimental.pallas import tpu as pltpu

_VMEM_LIMIT = 48 * 1024 * 1024  # leave headroom vs. v7x's 64 MiB physical VMEM


# ----------------------------------------------------------------------------
# helpers
# ----------------------------------------------------------------------------
def _round_up(x, m):
    return (x + m - 1) // m * m


def _pick_tile_c(cout):
    # 256 matches the v6e/v7x MXU N dimension; v5e simply runs it as 2x128 passes.
    for t in (256, 128):
        if cout % t == 0:
            return t
    return cout


def _pick_tile_h(H, N, W, Wq, Wr, cin_sum, tc, out_bytes, cap=20 << 20):
    """Largest H-tile (divisor of H) whose per-step VMEM footprint fits `cap`,
    preferring >=2 tiles so the spatial grid axis can be megacore-sharded."""
    def need(th):
        win = N * (th + 2) * Wq * cin_sum * 4          # f32 window scratch
        blk = 2 * N * (th + 2) * Wq * cin_sum * 2      # double-buffered bf16 inputs
        acc = N * th * Wr * tc * 4                     # f32 accumulator scratch
        out = 2 * N * th * W * tc * out_bytes          # double-buffered output
        wgt = 2 * 9 * cin_sum * tc * 2                 # double-buffered weights
        return win + blk + acc + out + wgt

    divs = [d for d in range(1, H + 1) if H % d == 0]
    fit = [d for d in divs if need(d) <= cap] or [1]
    multi = [d for d in fit if H // d >= 2]
    return max(multi) if multi else max(fit)


def _pick_rows_tile(rows, cap=1024):
    if rows % 8:
        return rows
    cands = [t for t in range(8, min(rows, cap) + 1, 8) if rows % t == 0]
    multi = [t for t in cands if rows // t >= 2]
    if multi:
        return max(multi)
    return max(cands) if cands else rows


@functools.lru_cache(maxsize=None)
def _roll_is_forward():
    """One-time probe of pltpu.roll's rotation direction (jnp.roll convention?)."""
    x = jnp.arange(8 * 128, dtype=jnp.float32).reshape(8, 128)

    def kernel(x_ref, o_ref):
        o_ref[...] = pltpu.roll(x_ref[...], 1, 0)

    y = pl.pallas_call(
        kernel, out_shape=jax.ShapeDtypeStruct((8, 128), jnp.float32))(x)
    return bool(jnp.allclose(y, jnp.roll(x, 1, 0)))


def _halo_map(i, j, *, th, r):
    # 1-row halo block: element row (i+1)*th + r of the H-padded input.
    return (0, (i + 1) * th + r, 0, 0)


# ----------------------------------------------------------------------------
# 3x3 conv (+ bias + ReLU) kernel, optionally fusing a channel concat of parts
# ----------------------------------------------------------------------------
def _conv3x3_kernel(*refs, nparts, N, TH, W, Wq, Wr, cins, relu, shifts):
    nin = 4 * nparts + 1
    in_refs, o_ref, scratch = refs[:nin], refs[nin], refs[nin + 1:]
    b_ref = in_refs[-1]
    acc_ref = scratch[nparts]
    THw = TH + 2
    rows = N * TH * Wr

    first = True
    for p in range(nparts):
        x_main = in_refs[3 * p]
        x_h0 = in_refs[3 * p + 1]
        x_h1 = in_refs[3 * p + 2]
        w_ref = in_refs[3 * nparts + p]
        xwin = scratch[p]
        cin = cins[p]

        # Assemble the haloed (TH+2)-row window once per part (halo rows come in
        # as two 1-row blocks so H tiles can overlap without relayouts).
        xwin[:, :TH] = x_main[...].astype(jnp.float32)
        xwin[:, TH:TH + 1] = x_h0[...].astype(jnp.float32)
        xwin[:, TH + 1:TH + 2] = x_h1[...].astype(jnp.float32)

        for kw in range(3):
            # kw shift = XLU sublane rotation instead of an unaligned W slice,
            # so there are no per-tap relayout copies of the window.
            xw = xwin[...]
            if shifts[kw]:
                xw = pltpu.roll(xw.reshape(N * THw, Wq, cin), shifts[kw], 1)
                xw = xw.reshape(N, THw, Wq, cin)
            xw = xw[:, :, :Wr, :].astype(jnp.bfloat16)
            for kh in range(3):
                patch = xw[:, kh:kh + TH].reshape(rows, cin)     # free reshape
                contrib = jnp.dot(patch, w_ref[3 * kh + kw],
                                  preferred_element_type=jnp.float32)
                if first:
                    acc_ref[...] = contrib
                    first = False
                else:
                    acc_ref[...] += contrib

    res = acc_ref[...] + b_ref[...]            # f32 epilogue (v5e friendly)
    if relu:
        res = jnp.maximum(res, 0.0)
    res = res.reshape(N, TH, Wr, -1)[:, :, :W, :]
    o_ref[...] = res.astype(o_ref.dtype)


def conv3x3(parts, w, b, *, relu=True, out_dtype=jnp.bfloat16):
    """3x3 / pad-1 conv (+bias, optional ReLU) over the channel concatenation of
    `parts` (list of NHWC arrays).  Each part gets its own weight slab so the
    concatenated tensor is never materialized in HBM (fused unetUp concat)."""
    N, H, W, _ = parts[0].shape
    cins = [int(q.shape[-1]) for q in parts]
    cin_sum = sum(cins)
    KH, KW, wcin, Cout = w.shape
    assert (KH, KW) == (3, 3) and wcin == cin_sum
    P = len(parts)

    Wq = _round_up(W + 2, 8)      # zero-padded width, rounded to 8 sublanes
    Wr = _round_up(W, 8)          # matmul width (relayout-free reshapes)
    tc = _pick_tile_c(Cout)
    out_bytes = 4 if out_dtype == jnp.float32 else 2
    TH = _pick_tile_h(H, N, W, Wq, Wr, cin_sum, tc, out_bytes)

    # TODO(synk): fold the edge zero-padding into the kernel (masked taps) to
    # save this one extra HBM pass per conv.
    padded = [jnp.pad(q.astype(jnp.bfloat16),
                      ((0, 0), (1, 1), (1, Wq - W - 1), (0, 0)))
              for q in parts]

    wb = w.astype(jnp.bfloat16)
    w_parts, off = [], 0
    for c in cins:
        w_parts.append(wb[:, :, off:off + c, :].reshape(9, c, Cout))
        off += c
    b2 = b.astype(jnp.float32).reshape(1, Cout)

    forward = _roll_is_forward()
    shifts = tuple(((Wq - kw) % Wq) if forward else kw for kw in range(3))

    in_specs, operands = [], []
    for xp, c in zip(padded, cins):
        in_specs.append(pl.BlockSpec((N, TH, Wq, c), lambda i, j: (0, i, 0, 0)))
        in_specs.append(pl.BlockSpec((N, 1, Wq, c),
                                     functools.partial(_halo_map, th=TH, r=0)))
        in_specs.append(pl.BlockSpec((N, 1, Wq, c),
                                     functools.partial(_halo_map, th=TH, r=1)))
        operands += [xp, xp, xp]
    for wp, c in zip(w_parts, cins):
        in_specs.append(pl.BlockSpec((9, c, tc), lambda i, j: (0, 0, j)))
        operands.append(wp)
    in_specs.append(pl.BlockSpec((1, tc), lambda i, j: (0, j)))
    operands.append(b2)

    kernel = functools.partial(
        _conv3x3_kernel, nparts=P, N=N, TH=TH, W=W, Wq=Wq, Wr=Wr,
        cins=tuple(cins), relu=relu, shifts=shifts)

    flops = 2 * N * H * W * 9 * cin_sum * Cout
    bytes_accessed = (sum(N * (H + 2) * Wq * c * 2 for c in cins)
                      + 9 * cin_sum * Cout * 2 + N * H * W * Cout * out_bytes)

    # Grid: (H tiles, Cout tiles); j (Cout) innermost so the input tile block
    # index is unchanged across j and Pallas does not re-DMA it.
    return pl.pallas_call(
        kernel,
        out_shape=jax.ShapeDtypeStruct((N, H, W, Cout), out_dtype),
        grid=(H // TH, Cout // tc),
        in_specs=in_specs,
        out_specs=pl.BlockSpec((N, TH, W, tc), lambda i, j: (0, i, 0, j)),
        scratch_shapes=(
            [pltpu.VMEM((N, TH + 2, Wq, c), jnp.float32) for c in cins]
            + [pltpu.VMEM((N * TH * Wr, tc), jnp.float32)]),
        compiler_params=pltpu.CompilerParams(
            dimension_semantics=("parallel", "parallel"),
            vmem_limit_bytes=_VMEM_LIMIT),
        cost_estimate=pl.CostEstimate(flops=flops, transcendentals=0,
                                      bytes_accessed=bytes_accessed),
    )(*operands)


# ----------------------------------------------------------------------------
# 1x1 conv head as a lane-dense row-tiled matmul
# ----------------------------------------------------------------------------
def _conv1x1_kernel(x_ref, w_ref, b_ref, o_ref, *, relu):
    acc = jnp.dot(x_ref[...], w_ref[...], preferred_element_type=jnp.float32)
    acc = acc + b_ref[...]
    if relu:
        acc = jnp.maximum(acc, 0.0)
    o_ref[...] = acc.astype(o_ref.dtype)


def conv1x1(x, w, b, *, relu=False, out_dtype=jnp.float32):
    N, H, W, Cin = x.shape
    Cout = w.shape[-1]
    w2 = w.reshape(Cin, Cout).astype(jnp.bfloat16)
    b2 = b.astype(jnp.float32).reshape(1, Cout)
    Cp = Cout
    if Cout % 128:                       # lane-dense stores, slice back after
        Cp = _round_up(Cout, 128)
        w2 = jnp.pad(w2, ((0, 0), (0, Cp - Cout)))
        b2 = jnp.pad(b2, ((0, 0), (0, Cp - Cout)))

    rows = N * H * W
    x2 = x.astype(jnp.bfloat16).reshape(rows, Cin)
    tr = _pick_rows_tile(rows)
    tc = _pick_tile_c(Cp)

    out = pl.pallas_call(
        functools.partial(_conv1x1_kernel, relu=relu),
        out_shape=jax.ShapeDtypeStruct((rows, Cp), jnp.float32),
        grid=(rows // tr, Cp // tc),
        in_specs=[
            pl.BlockSpec((tr, Cin), lambda i, j: (i, 0)),
            pl.BlockSpec((Cin, tc), lambda i, j: (0, j)),
            pl.BlockSpec((1, tc), lambda i, j: (0, j)),
        ],
        out_specs=pl.BlockSpec((tr, tc), lambda i, j: (i, j)),
        compiler_params=pltpu.CompilerParams(
            dimension_semantics=("parallel", "parallel"),
            vmem_limit_bytes=_VMEM_LIMIT),
        cost_estimate=pl.CostEstimate(
            flops=2 * rows * Cin * Cp, transcendentals=0,
            bytes_accessed=rows * Cin * 2 + Cin * Cp * 2 + rows * Cp * 4),
    )(x2, w2, b2)

    out = out.reshape(N, H, W, Cp)
    if Cp != Cout:
        out = out[..., :Cout]
    return out.astype(out_dtype)


# ----------------------------------------------------------------------------
# cheap plain-JAX glue
# ----------------------------------------------------------------------------
def maxpool2(x):
    N, H, W, C = x.shape
    return x.reshape(N, H // 2, 2, W // 2, 2, C).max(axis=(2, 4))


def upsample_bilinear_2x(x):
    # nn.UpsamplingBilinear2d(scale_factor=2) -> align_corners=True semantics.
    N, H, W, C = x.shape

    def interp_matrix(n_in):
        n_out = 2 * n_in
        if n_in == 1:
            return jnp.ones((n_out, n_in), jnp.float32)
        src = jnp.arange(n_out, dtype=jnp.float32) * (n_in - 1) / (n_out - 1)
        lo = jnp.clip(jnp.floor(src).astype(jnp.int32), 0, n_in - 2)
        frac = src - lo.astype(jnp.float32)
        r = jnp.arange(n_out)
        M = jnp.zeros((n_out, n_in), jnp.float32)
        M = M.at[r, lo].set(1.0 - frac)
        M = M.at[r, lo + 1].add(frac)
        return M

    Mh, Mw = interp_matrix(H), interp_matrix(W)
    y = jnp.einsum('ih,nhwc->niwc', Mh, x)
    y = jnp.einsum('jw,niwc->nijc', Mw, y)
    return y


def unet_up(inputs1, inputs2, conv1_wb, conv2_wb):
    # unetUp.forward, with cat([inputs1, up(inputs2)]) fused into the first conv.
    # TODO(synk): also fuse the bilinear 2x upsample into the conv kernel.
    up = upsample_bilinear_2x(inputs2)
    x = conv3x3([inputs1, up], *conv1_wb)
    return conv3x3([x], *conv2_wb)


# ----------------------------------------------------------------------------
# parameters (deterministic synthetic init - no checkpoint loading)
# ----------------------------------------------------------------------------
_CONV_SPECS = [
    # VGG16 feature extractor
    ('b1c1', 3, 3, 3, 64), ('b1c2', 3, 3, 64, 64),
    ('b2c1', 3, 3, 64, 128), ('b2c2', 3, 3, 128, 128),
    ('b3c1', 3, 3, 128, 256), ('b3c2', 3, 3, 256, 256), ('b3c3', 3, 3, 256, 256),
    ('b4c1', 3, 3, 256, 512), ('b4c2', 3, 3, 512, 512), ('b4c3', 3, 3, 512, 512),
    ('b5c1', 3, 3, 512, 512), ('b5c2', 3, 3, 512, 512), ('b5c3', 3, 3, 512, 512),
    # decoder: unetUp(in_filters=[192,384,768,1024], out_filters=[64,128,256,512])
    ('up4c1', 3, 3, 1024, 512), ('up4c2', 3, 3, 512, 512),
    ('up3c1', 3, 3, 768, 256), ('up3c2', 3, 3, 256, 256),
    ('up2c1', 3, 3, 384, 128), ('up2c2', 3, 3, 128, 128),
    ('up1c1', 3, 3, 192, 64), ('up1c2', 3, 3, 64, 64),
    # final 1x1 conv to num_classes=21 (no ReLU)
    ('final', 1, 1, 64, 21),
]
# NOTE: zeroConv is constructed in __init__ but never used in forward when
# MD_Module=False (default), so its parameters are omitted.


def init_params(key):
    params = {}
    keys = jax.random.split(key, len(_CONV_SPECS))
    for k, (name, kh, kw_, cin, cout) in zip(keys, _CONV_SPECS):
        wk, bk = jax.random.split(k)
        fan_in = kh * kw_ * cin
        wgt = jax.random.normal(wk, (kh, kw_, cin, cout), jnp.float32) / jnp.sqrt(
            jnp.float32(fan_in))
        bias = jax.random.normal(bk, (cout,), jnp.float32) * 0.01
        params[name] = (wgt, bias)
    return params


# ----------------------------------------------------------------------------
# OcclusionNet.forward  (backbone='vgg', MD_Module=False, MRC_Module=False)
# ----------------------------------------------------------------------------
def occlusion_net_forward(inputs_nchw, params):
    p = params
    x = jnp.transpose(inputs_nchw, (0, 2, 3, 1)).astype(jnp.float32)  # NCHW->NHWC
    assert x.shape[1] % 16 == 0 and x.shape[2] % 16 == 0, \
        "spatial dims must be divisible by 16 (4 max-pools)"

    def c(t, name):
        w_, b_ = p[name]
        return conv3x3([t], w_, b_)

    # TODO(synk): im2col the Cin=3 stem conv into a single K=27 matmul.
    x1 = c(x, 'b1c1'); feat1 = c(x1, 'b1c2')
    t = maxpool2(feat1); t = c(t, 'b2c1'); feat2 = c(t, 'b2c2')
    t = maxpool2(feat2); t = c(t, 'b3c1'); t = c(t, 'b3c2'); feat3 = c(t, 'b3c3')
    t = maxpool2(feat3); t = c(t, 'b4c1'); t = c(t, 'b4c2'); feat4 = c(t, 'b4c3')
    t = maxpool2(feat4); t = c(t, 'b5c1'); t = c(t, 'b5c2'); feat5 = c(t, 'b5c3')

    up4 = unet_up(feat4, feat5, p['up4c1'], p['up4c2'])
    up3 = unet_up(feat3, up4, p['up3c1'], p['up3c2'])
    up2 = unet_up(feat2, up3, p['up2c1'], p['up2c2'])
    up1 = unet_up(feat1, up2, p['up1c1'], p['up1c2'])

    w_, b_ = p['final']
    final = conv1x1(up1, w_, b_, relu=False, out_dtype=jnp.float32)
    return jnp.transpose(final, (0, 3, 1, 2))  # NHWC -> NCHW


# ----------------------------------------------------------------------------
# pure-JAX reference (same bf16 casts) used for self-checks
# ----------------------------------------------------------------------------
def _ref_conv3x3(parts, w, b, relu=True, out_dtype=jnp.bfloat16):
    x = jnp.concatenate([q.astype(jnp.bfloat16) for q in parts], axis=-1)
    y = jax.lax.conv_general_dilated(
        x, w.astype(jnp.bfloat16), (1, 1), ((1, 1), (1, 1)),
        dimension_numbers=('NHWC', 'HWIO', 'NHWC'),
        preferred_element_type=jnp.float32)
    y = y + b.astype(jnp.float32)
    if relu:
        y = jnp.maximum(y, 0.0)
    return y.astype(out_dtype)


def _ref_conv1x1(x, w, b):
    y = jnp.einsum('nhwc,co->nhwo', x.astype(jnp.bfloat16),
                   w.reshape(w.shape[2], w.shape[3]).astype(jnp.bfloat16),
                   preferred_element_type=jnp.float32)
    return y + b.astype(jnp.float32)


def _ref_forward(inputs_nchw, params):
    p = params
    x = jnp.transpose(inputs_nchw, (0, 2, 3, 1)).astype(jnp.float32)

    def c(parts, name):
        w_, b_ = p[name]
        return _ref_conv3x3(parts, w_, b_)

    def up(i1, i2, n1, n2):
        u = upsample_bilinear_2x(i2)
        return c([c([i1, u], n1)], n2)

    x1 = c([x], 'b1c1'); feat1 = c([x1], 'b1c2')
    t = maxpool2(feat1); t = c([t], 'b2c1'); feat2 = c([t], 'b2c2')
    t = maxpool2(feat2); t = c([t], 'b3c1'); t = c([t], 'b3c2'); feat3 = c([t], 'b3c3')
    t = maxpool2(feat3); t = c([t], 'b4c1'); t = c([t], 'b4c2'); feat4 = c([t], 'b4c3')
    t = maxpool2(feat4); t = c([t], 'b5c1'); t = c([t], 'b5c2'); feat5 = c([t], 'b5c3')

    up4 = up(feat4, feat5, 'up4c1', 'up4c2')
    up3 = up(feat3, up4, 'up3c1', 'up3c2')
    up2 = up(feat2, up3, 'up2c1', 'up2c2')
    up1 = up(feat1, up2, 'up1c1', 'up1c2')

    w_, b_ = p['final']
    final = _ref_conv1x1(up1, w_, b_)
    return jnp.transpose(final, (0, 3, 1, 2))


if __name__ == "__main__":
    key = jax.random.PRNGKey(0)
    pkey, xkey, tkey = jax.random.split(key, 3)
    params = init_params(pkey)

    # --- kernel unit checks against XLA references (bf16 inputs, f32 accum) ---
    _roll_is_forward()   # probe the hardware rotate direction once
    uk = jax.random.split(tkey, 8)
    xa = jax.random.normal(uk[0], (2, 8, 8, 24), jnp.float32)
    wa = jax.random.normal(uk[1], (3, 3, 24, 64), jnp.float32) * 0.1
    ba = jax.random.normal(uk[2], (64,), jnp.float32) * 0.1
    got = conv3x3([xa], wa, ba, relu=True, out_dtype=jnp.float32)
    want = _ref_conv3x3([xa], wa, ba, relu=True, out_dtype=jnp.float32)
    assert jnp.allclose(got, want, atol=2e-2, rtol=2e-2), \
        f"conv3x3 mismatch: {float(jnp.max(jnp.abs(got - want)))}"

    xb1 = jax.random.normal(uk[3], (2, 4, 4, 16), jnp.float32)
    xb2 = jax.random.normal(uk[4], (2, 4, 4, 48), jnp.float32)
    wb = jax.random.normal(uk[5], (3, 3, 64, 128), jnp.float32) * 0.1
    bb = jax.random.normal(uk[6], (128,), jnp.float32) * 0.1
    got = conv3x3([xb1, xb2], wb, bb, relu=True, out_dtype=jnp.float32)
    want = _ref_conv3x3([xb1, xb2], wb, bb, relu=True, out_dtype=jnp.float32)
    assert jnp.allclose(got, want, atol=2e-2, rtol=2e-2), \
        f"fused conv3x3 mismatch: {float(jnp.max(jnp.abs(got - want)))}"

    xc = jax.random.normal(uk[7], (2, 8, 8, 64), jnp.float32)
    wc, bc = params['final']
    got = conv1x1(xc, wc, bc, relu=False)
    want = _ref_conv1x1(xc, wc, bc)
    assert jnp.allclose(got, want, atol=2e-2, rtol=2e-2), \
        f"conv1x1 mismatch: {float(jnp.max(jnp.abs(got - want)))}"

    # --- full OcclusionNet forward ---
    x = jax.random.normal(xkey, (2, 3, 32, 32), jnp.float32)
    fwd = jax.jit(occlusion_net_forward)
    out = jax.block_until_ready(fwd(x, params))

    assert out.shape == (2, 21, 32, 32), out.shape
    assert out.dtype == jnp.float32
    assert bool(jnp.all(jnp.isfinite(out)))

    ref = jax.block_until_ready(jax.jit(_ref_forward)(x, params))
    diff = jnp.abs(out - ref)
    assert float(jnp.max(diff)) < 1.5 and float(jnp.mean(diff)) < 0.1, \
        (float(jnp.max(diff)), float(jnp.mean(diff)))

    print("KERNEL_OK")
</pallas_src>

<mosaic_0001>
module attributes {stable_mosaic.version = 11 : i64} {
  func.func @kernel(%arg0: memref<8x128xf32, #tpu.memory_space<vmem>>, %arg1: memref<8x128xf32, #tpu.memory_space<vmem>>) attributes {dimension_semantics = [], scalar_prefetch = 0 : i64, scratch_operands = 0 : i64, tpu.core_type = #tpu.core_type<tc>} {
    %c0 = arith.constant 0 : index
    %c0_0 = arith.constant 0 : index
    %0 = vector.load %arg0[%c0, %c0_0] : memref<8x128xf32, #tpu.memory_space<vmem>>, vector<8x128xf32>
    %c1_i32 = arith.constant 1 : i32
    %1 = tpu.dynamic_rotate %0 by %c1_i32 dim 0 : vector<8x128xf32>, i32 -> vector<8x128xf32>
    %c0_1 = arith.constant 0 : index
    %c0_2 = arith.constant 0 : index
    %2 = vector.load %arg1[%c0_1, %c0_2] : memref<8x128xf32, #tpu.memory_space<vmem>>, vector<8x128xf32>
    tpu.vector_store %arg1[%c0_1, %c0_2], %1 {strides = array<i32>} : memref<8x128xf32, #tpu.memory_space<vmem>>, vector<8x128xf32>,
    return
  }
}

</mosaic_0001>

<llo_original>
// kernel: tpu_custom_call.1
$region0: #{tpu_custom_call.1}
  #allocation0 [shape = 'u32[]', space=smem, size = 0x4, offset = 0x4, fixed_abs, tag = 'smem constant byte address 0x4 - core index']
  #allocation1 [shape = 'u32[144,128]{1,0:T(1,128)}', space=vmem, size = 0x12000, scoped, tag = 'internal scratch']
  %s0 = inlined_call_operand.hbm [shape: f32[8,128], index: 0, kind: input, shape index: {}]
  %s1 = inlined_call_operand.hbm [shape: f32[8,128], index: 1, kind: output, shape index: {}]
  %s2 = sld [smem:[#allocation0]]
  $region18: #{tpu_custom_call.1} parent=0
    _
  %s4 = ssub.s32 1, %s2
  %s5 = scalar_select 0, %s4, %s2
  $region1: #{tpu_custom_call.1} parent=0
    #allocation2 [shape = 'u8[4096]{0}', space=vmem, size = 0x1000, scoped, tag = 'input window, operand 0, single buffered']
    #allocation3 [shape = 's32[1]{0}', space=sflag, size = 0x4, scoped, tag = 'scoped memory for tpu_custom_call.1']
    #allocation4 [shape = 's32[1]{0}', space=sflag, size = 0x4, scoped, tag = 'scoped memory for tpu_custom_call.1']
    #allocation5 [shape = 'u8[4096]{0}', space=vmem, size = 0x1000, scoped, tag = 'output window, operand 0, single buffered']
    %6 = vsyncpa [#allocation3], 0
    %7 = vsyncpa [#allocation4], 0
    // Predicated region
    $region2: #{tpu_custom_call.1} parent=1 // pred_check
      _
    $region3: #{tpu_custom_call.1} parent=1 // pred_check_branch
      %9 = sbr.rel (0) target = $region5
    $region4: #{tpu_custom_call.1} parent=1 // pred_region
      %s11 = ssub.s32 128, 128
      %12 = vsyncadd [#allocation3], %s11
      %s14 = sshll.u32 [#allocation2], 4
      %s15 = int_to_ptr.vmem [resolvable:$true] %s14
      %17 = dma.hbm_to_vmem [thread:$0]  %s0, 128, %s15, [#allocation3]
    $region5: #{tpu_custom_call.1} parent=1 // pred_fallthru
      _
    // Predicated region
    $region6: #{tpu_custom_call.1} parent=1 // pred_check
      _
    $region7: #{tpu_custom_call.1} parent=1 // pred_check_branch
      %19 = sbr.rel (0) target = $region9
    $region8: #{tpu_custom_call.1} parent=1 // pred_region
      %20 = dma.done [#allocation3], 128
    $region9: #{tpu_custom_call.1} parent=1 // pred_fallthru
      _
    %v21 = vld [vmem:[#allocation2] sm:$0xff]
    %v22 = vrot.slane %v21, 7
    %23 = vst [vmem:[#allocation5] sm:$0xff] %v22
    // Predicated region
    $region10: #{tpu_custom_call.1} parent=1 // pred_check
      _
    $region11: #{tpu_custom_call.1} parent=1 // pred_check_branch
      %25 = sbr.rel (0) target = $region13
    $region12: #{tpu_custom_call.1} parent=1 // pred_region
      %s27 = ssub.s32 128, 128
      %28 = vsyncadd [#allocation4], %s27
      %s30 = sshll.u32 [#allocation5], 4
      %s31 = int_to_ptr.vmem [resolvable:$true] %s30
      %33 = dma.vmem_to_hbm [thread:$0]  %s31, 128, %s1, [#allocation4]
    $region13: #{tpu_custom_call.1} parent=1 // pred_fallthru
      _
    // Predicated region
    $region14: #{tpu_custom_call.1} parent=1 // pred_check
      _
    $region15: #{tpu_custom_call.1} parent=1 // pred_check_branch
      %35 = sbr.rel (0) target = $region17
    $region16: #{tpu_custom_call.1} parent=1 // pred_region
      %36 = dma.done [#allocation4], 128
    $region17: #{tpu_custom_call.1} parent=1 // pred_fallthru
      _
    %37 = vsyncpa [#allocation3], 1
    %38 = vsyncpa [#allocation4], 1

</llo_original>
